<compile_context>
chip_gen: v5e
topology: v5e:2x2
jax: 0.10.0
libtpu: 0.0.40
codegen_flags: <defaults>
</compile_context>

<pallas_src>
import math
import functools

import jax
import jax.numpy as jnp
from jax.experimental import pallas as pl
from jax.experimental.pallas import tpu as pltpu


# ---------------------------------------------------------------------------
# Parameter/buffer setup (glue, plain JAX) — mirrors the PyTorch buffer.
# ---------------------------------------------------------------------------
def _make_pe_table(max_len: int, d_model: int) -> jnp.ndarray:
    position = jnp.arange(0, max_len, dtype=jnp.float32)[:, None]
    div_term = jnp.exp(
        jnp.arange(0, d_model, 2, dtype=jnp.float32) * (-math.log(10000.0) / d_model)
    )
    angles = position * div_term
    pe = jnp.zeros((max_len, d_model), dtype=jnp.float32)
    pe = pe.at[:, 0::2].set(jnp.sin(angles))
    pe = pe.at[:, 1::2].set(jnp.cos(angles))
    return pe


# ---------------------------------------------------------------------------
# Kernels (pure elementwise; all blocks are (ts, C) 2-D tiles)
# ---------------------------------------------------------------------------
def _pe_add_kernel(x_ref, pe_ref, o_ref):
    """Eval-mode forward: out = x + pe (nn.Dropout is identity in eval)."""
    y = x_ref[...].astype(jnp.float32) + pe_ref[...]
    o_ref[...] = y.astype(o_ref.dtype)


def _pe_add_dropout_kernel(x_ref, pe_ref, u_ref, o_ref, *, p: float, inv_keep: float):
    """Training-mode forward: inverted dropout applied after the PE add.

    u_ref holds uniform(0,1) f32 samples generated wrapper-side; keep iff u >= p.
    The multiply happens in f32 and there is a single downcast at the store.
    """
    y = x_ref[...].astype(jnp.float32) + pe_ref[...]
    keep = u_ref[...] >= jnp.float32(p)
    o_ref[...] = jnp.where(keep, y * jnp.float32(inv_keep), jnp.float32(0.0)).astype(o_ref.dtype)


# ---------------------------------------------------------------------------
# Tiling helpers
# ---------------------------------------------------------------------------
def _round_up(a: int, b: int) -> int:
    return ((a + b - 1) // b) * b


def _sublane_unit(dtype) -> int:
    """Native sublane packing unit for a dtype: 8 for 4-byte, 16 for 2-byte, 32 for 1-byte."""
    return {4: 8, 2: 16, 1: 32}.get(jnp.dtype(dtype).itemsize, 8)


def _chip_budgets():
    """(per-tile byte budget, vmem_limit_bytes), gated on physical VMEM size."""
    try:
        info = pltpu.get_tpu_info()
        vmem = getattr(info, "vmem_capacity_bytes", None)
        if vmem is not None and vmem >= 96 * 1024 * 1024:      # v5e / v6e: 128 MiB VMEM
            return 4 * 1024 * 1024, 64 * 1024 * 1024
    except Exception:
        pass
    return 2 * 1024 * 1024, 32 * 1024 * 1024                    # v7x / unknown: conservative


def _pick_col_block(B: int, D: int) -> int:
    """Column block width over the folded (B*D) axis.

    Must be a multiple of D (whole batches, so the PE repeat pattern aligns) and
    either a multiple of 128 (lane-dense stores) or the full folded width.
    """
    BD = B * D
    if D % 128 == 0:
        return D                     # already lane-dense: one batch per column block
    if BD <= 128:
        return BD                    # tiny: full fold (block == full dim is allowed)
    nb0 = 128 // math.gcd(D, 128)    # smallest whole-batch count giving a 128-multiple
    if nb0 * D <= BD:
        return nb0 * D
    return BD                        # batch too small for a 128-multiple: full fold


# ---------------------------------------------------------------------------
# Wrapper
# ---------------------------------------------------------------------------
def positional_encoding_forward(
    x: jnp.ndarray,
    pe_table: jnp.ndarray,
    *,
    dropout_p: float = 0.1,
    training: bool = False,
    rng=None,
) -> jnp.ndarray:
    """Pallas implementation of PositionalEncoding.forward.

    x:        (S, B, D) seq-first, as in the PyTorch module
    pe_table: (max_len, D) float32 buffer
    """
    S, B, D = x.shape
    max_len, d_model = pe_table.shape
    assert d_model == D, "pe_table d_model must match x"
    assert S <= max_len, "sequence longer than max_len"
    assert 0.0 <= dropout_p < 1.0, "dropout_p must be in [0, 1)"

    itemsize = jnp.dtype(x.dtype).itemsize
    row_unit = max(8, _sublane_unit(x.dtype))        # dtype-aware sublane unit
    budget, vmem_limit = _chip_budgets()

    # ---- Fold (B, D) into one contiguous lane axis (free reshape) ---------
    BD = B * D
    xf = x.reshape(S, BD)

    # ---- Column block: whole batches, lane-dense when possible ------------
    C = _pick_col_block(B, D)
    S_pad = _round_up(S, row_unit)
    # Widen the column block while the full (padded) seq extent still fits the
    # budget (keeps tiles big when S is small). Doubling preserves both the
    # multiple-of-D and multiple-of-128 properties.
    while 2 * C <= BD and S_pad * (2 * C) * itemsize <= budget:
        C *= 2
    nb = C // D

    # ---- Row block: fill the budget, multiple of the sublane unit ---------
    ts = max(row_unit, (budget // max(1, C * itemsize)) // row_unit * row_unit)
    ts = min(ts, S_pad)
    # If everything fits in a single tile, split the seq axis so both v7x
    # TensorCores get work under ("parallel","parallel").
    if pl.cdiv(S, ts) == 1 and pl.cdiv(BD, C) == 1 and S_pad >= 2 * row_unit:
        ts = _round_up(pl.cdiv(S, 2), row_unit)

    # ---- PE replicated to exactly one column block (tiny, resident) -------
    pe_s = pe_table[:S].astype(jnp.float32)
    pe_rep = pe_s if nb == 1 else jnp.tile(pe_s, (1, nb))        # (S, C)

    grid = (pl.cdiv(S, ts), pl.cdiv(BD, C))
    blk = (ts, C)
    x_spec = pl.BlockSpec(blk, lambda si, ci: (si, ci))
    pe_spec = pl.BlockSpec(blk, lambda si, ci: (si, 0))          # resident across columns
    out_spec = pl.BlockSpec(blk, lambda si, ci: (si, ci))
    out_shape = jax.ShapeDtypeStruct((S, BD), x.dtype)

    compiler_params = pltpu.CompilerParams(
        dimension_semantics=("parallel", "parallel"),            # megacore sharding
        vmem_limit_bytes=vmem_limit,
    )

    if (not training) or dropout_p == 0.0:
        out2 = pl.pallas_call(
            _pe_add_kernel,
            out_shape=out_shape,
            grid=grid,
            in_specs=[x_spec, pe_spec],
            out_specs=out_spec,
            compiler_params=compiler_params,
        )(xf, pe_rep)
        return out2.reshape(S, B, D)

    # Training path: inverted dropout. Mask uniforms are generated wrapper-side
    # (semantically equivalent to torch dropout; cannot bit-match torch's RNG).
    # TODO(synk): replace with in-kernel pltpu.prng_random_bits on TPU-only builds
    # to drop the extra mask read (the TPU HW PRNG does not lower in interpret mode).
    if rng is None:
        rng = jax.random.PRNGKey(0)
    u = jax.random.uniform(rng, (S, BD), dtype=jnp.float32)
    kern = functools.partial(
        _pe_add_dropout_kernel,
        p=float(dropout_p),
        inv_keep=1.0 / (1.0 - float(dropout_p)),
    )
    out2 = pl.pallas_call(
        kern,
        out_shape=out_shape,
        grid=grid,
        in_specs=[x_spec, pe_spec, x_spec],     # mask uses the same blocking as x
        out_specs=out_spec,
        compiler_params=compiler_params,
    )(xf, pe_rep, u)
    return out2.reshape(S, B, D)


# ---------------------------------------------------------------------------
# Demo / self-check
# ---------------------------------------------------------------------------
if __name__ == "__main__":
    # Small shapes consistent with the module's forward: (seq, batch, d_model).
    S, B, D = 8, 2, 32
    MAX_LEN = 2000

    key = jax.random.PRNGKey(0)
    kx, kd = jax.random.split(key)
    x = jax.random.normal(kx, (S, B, D), dtype=jnp.float32)

    pe_table = _make_pe_table(MAX_LEN, D)
    ref = x + pe_table[:S][:, None, :]

    # Eval-mode forward (dropout == identity).
    out = positional_encoding_forward(x, pe_table, dropout_p=0.1, training=False)
    out = jax.block_until_ready(out)
    assert out.shape == (S, B, D)
    assert jnp.allclose(out, ref, atol=1e-5), "eval-mode mismatch vs reference"

    # Training-mode forward: every element is either 0 or ref/(1-p).
    p = 0.1
    out_tr = positional_encoding_forward(x, pe_table, dropout_p=p, training=True, rng=kd)
    out_tr = jax.block_until_ready(out_tr)
    assert out_tr.shape == (S, B, D)
    scaled_ref = ref * (1.0 / (1.0 - p))
    ok = jnp.all((out_tr == 0) | jnp.isclose(out_tr, scaled_ref, rtol=1e-5, atol=1e-5))
    assert bool(ok), "training-mode values are not {0, x/(1-p)}"
    keep_frac = float(jnp.mean((out_tr != 0).astype(jnp.float32)))
    assert 0.6 < keep_frac <= 1.0, f"dropout keep fraction looks wrong: {keep_frac}"

    print("KERNEL_OK")
</pallas_src>

<mosaic_0001>
module attributes {stable_mosaic.version = 11 : i64} {
  func.func @_pe_add_kernel(%arg0: i32, %arg1: i32, %arg2: memref<8x64xf32, #tpu.memory_space<vmem>>, %arg3: memref<8x64xf32, #tpu.memory_space<vmem>>, %arg4: memref<8x64xf32, #tpu.memory_space<vmem>>) attributes {dimension_semantics = [#tpu.dimension_semantics<parallel>, #tpu.dimension_semantics<parallel>], iteration_bounds = array<i64: 1, 1>, scalar_prefetch = 0 : i64, scratch_operands = 0 : i64, tpu.core_type = #tpu.core_type<tc>, window_params = [{transform_indices = @transform_0, window_bounds = array<i64: 8, 64>}, {transform_indices = @transform_1, window_bounds = array<i64: 8, 64>}, {transform_indices = @transform_2, window_bounds = array<i64: 8, 64>}]} {
    %c0 = arith.constant 0 : index
    %c0_0 = arith.constant 0 : index
    %0 = vector.load %arg2[%c0, %c0_0] : memref<8x64xf32, #tpu.memory_space<vmem>>, vector<8x64xf32>
    %c0_1 = arith.constant 0 : index
    %c0_2 = arith.constant 0 : index
    %1 = vector.load %arg3[%c0_1, %c0_2] : memref<8x64xf32, #tpu.memory_space<vmem>>, vector<8x64xf32>
    %2 = arith.addf %0, %1 : vector<8x64xf32>
    %c0_3 = arith.constant 0 : index
    %c0_4 = arith.constant 0 : index
    %3 = vector.load %arg4[%c0_3, %c0_4] : memref<8x64xf32, #tpu.memory_space<vmem>>, vector<8x64xf32>
    tpu.vector_store %arg4[%c0_3, %c0_4], %2 {strides = array<i32>} : memref<8x64xf32, #tpu.memory_space<vmem>>, vector<8x64xf32>,
    return
  }
  func.func @transform_0(%arg0: i32, %arg1: i32) -> (i32, i32) {
    %c0_i32 = arith.constant 0 : i32
    return %arg0, %arg1 : i32, i32
  }
  func.func @transform_1(%arg0: i32, %arg1: i32) -> (i32, i32) {
    %c0_i32 = arith.constant 0 : i32
    %c0_i32_0 = arith.constant 0 : i32
    return %arg0, %c0_i32 : i32, i32
  }
  func.func @transform_2(%arg0: i32, %arg1: i32) -> (i32, i32) {
    %c0_i32 = arith.constant 0 : i32
    return %arg0, %arg1 : i32, i32
  }
}

</mosaic_0001>

<llo_original>
// kernel: tpu_custom_call.1
$region0: #{tpu_custom_call.1}
  #allocation0 [shape = 'u32[]', space=smem, size = 0x4, offset = 0x4, fixed_abs, tag = 'smem constant byte address 0x4 - core index']
  #allocation1 [shape = 'u32[72,128]{1,0:T(1,128)}', space=vmem, size = 0x9000, scoped, tag = 'internal scratch']
  %s0 = inlined_call_operand.hbm [shape: f32[8,64], index: 0, kind: input, shape index: {}]
  %s1 = inlined_call_operand.hbm [shape: f32[8,64], index: 1, kind: input, shape index: {}]
  %s2 = inlined_call_operand.hbm [shape: f32[8,64], index: 2, kind: output, shape index: {}]
  %s3 = sld [smem:[#allocation0]]
  $region26: #{tpu_custom_call.1} parent=0
    _
  %s5 = ssub.s32 1, %s3
  %s6 = scalar_select 0, %s5, %s3
  $region1: #{tpu_custom_call.1} parent=0
    #allocation2 [shape = 'u8[4096]{0}', space=vmem, size = 0x1000, scoped, tag = 'input window, operand 0, single buffered']
    #allocation3 [shape = 's32[1]{0}', space=sflag, size = 0x4, scoped, tag = 'scoped memory for tpu_custom_call.1']
    #allocation4 [shape = 's32[1]{0}', space=sflag, size = 0x4, scoped, tag = 'scoped memory for tpu_custom_call.1']
    #allocation5 [shape = 'u8[4096]{0}', space=vmem, size = 0x1000, scoped, tag = 'input window, operand 1, single buffered']
    #allocation6 [shape = 's32[1]{0}', space=sflag, size = 0x4, scoped, tag = 'scoped memory for tpu_custom_call.1']
    #allocation7 [shape = 'u8[4096]{0}', space=vmem, size = 0x1000, scoped, tag = 'output window, operand 0, single buffered']
    %7 = vsyncpa [#allocation3], 0
    %8 = vsyncpa [#allocation6], 0
    %9 = vsyncpa [#allocation4], 0
    // Predicated region
    $region2: #{tpu_custom_call.1} parent=1 // pred_check
      _
    $region3: #{tpu_custom_call.1} parent=1 // pred_check_branch
      %11 = sbr.rel (0) target = $region5
    $region4: #{tpu_custom_call.1} parent=1 // pred_region
      %13 = vsyncadd [#allocation3], 0
      %s15 = sshll.u32 %s0, 4
      %s16 = int_to_ptr.hbm [resolvable:$true] %s15
      %s17 = sshll.u32 [#allocation2], 4
      %s18 = int_to_ptr.vmem [resolvable:$true] %s17
      %20 = dma.hbm_to_vmem [thread:$0]  %s16, 128, %s18, [#allocation3]
    $region5: #{tpu_custom_call.1} parent=1 // pred_fallthru
      _
    // Predicated region
    $region6: #{tpu_custom_call.1} parent=1 // pred_check
      _
    $region7: #{tpu_custom_call.1} parent=1 // pred_check_branch
      %22 = sbr.rel (0) target = $region9
    $region8: #{tpu_custom_call.1} parent=1 // pred_region
      %24 = vsyncadd [#allocation6], 0
      %s26 = sshll.u32 %s1, 4
      %s27 = int_to_ptr.hbm [resolvable:$true] %s26
      %s28 = sshll.u32 [#allocation5], 4
      %s29 = int_to_ptr.vmem [resolvable:$true] %s28
      %31 = dma.hbm_to_vmem [thread:$0]  %s27, 128, %s29, [#allocation6]
    $region9: #{tpu_custom_call.1} parent=1 // pred_fallthru
      _
    // Predicated region
    $region10: #{tpu_custom_call.1} parent=1 // pred_check
      _
    $region11: #{tpu_custom_call.1} parent=1 // pred_check_branch
      %33 = sbr.rel (0) target = $region13
    $region12: #{tpu_custom_call.1} parent=1 // pred_region
      %35 = dma.done [#allocation3], 128
    $region13: #{tpu_custom_call.1} parent=1 // pred_fallthru
      _
    // Predicated region
    $region14: #{tpu_custom_call.1} parent=1 // pred_check
      _
    $region15: #{tpu_custom_call.1} parent=1 // pred_check_branch
      %37 = sbr.rel (0) target = $region17
    $region16: #{tpu_custom_call.1} parent=1 // pred_region
      %39 = dma.done [#allocation6], 128
    $region17: #{tpu_custom_call.1} parent=1 // pred_fallthru
      _
    %v40 = vld [vmem:[#allocation2] sm:$0xff]
    %v41 = vld [vmem:[#allocation5] sm:$0xff]
    %v42 = vadd.f32 %v40, %v41
    %vm43 = vcmask 523264
    %44 = vst.msk [vmem:[#allocation7] sm:$0xff] %vm43, %v42
    // Predicated region
    $region18: #{tpu_custom_call.1} parent=1 // pred_check
      _
    $region19: #{tpu_custom_call.1} parent=1 // pred_check_branch
      %46 = sbr.rel (0) target = $region21
    $region20: #{tpu_custom_call.1} parent=1 // pred_region
      %48 = vsyncadd [#allocation4], 0
      %s50 = sshll.u32 [#allocation7], 4
      %s51 = int_to_ptr.vmem [resolvable:$true] %s50
      %s52 = sshll.u32 %s2, 4
      %s53 = int_to_ptr.hbm [resolvable:$true] %s52
      %55 = dma.vmem_to_hbm [thread:$0]  %s51, 128, %s53, [#allocation4]
    $region21: #{tpu_custom_call.1} parent=1 // pred_fallthru
      _
    // Predicated region
    $region22: #{tpu_custom_call.1} parent=1 // pred_check
      _
    $region23: #{tpu_custom_call.1} parent=1 // pred_check_branch
      %57 = sbr.rel (0) target = $region25
    $region24: #{tpu_custom_call.1} parent=1 // pred_region
      %59 = dma.done [#allocation4], 128
    $region25: #{tpu_custom_call.1} parent=1 // pred_fallthru
      _
    %60 = vsyncpa [#allocation3], 1
    %61 = vsyncpa [#allocation6], 1
    %62 = vsyncpa [#allocation4], 1

</llo_original>
